<compile_context>
chip_gen: v5e
topology: v5e:2x2
jax: 0.10.0
libtpu: 0.0.40
codegen_flags: <defaults>
</compile_context>

<pallas_src>
import jax
import jax.numpy as jnp
from jax.experimental import pallas as pl
from jax.experimental.pallas import tpu as pltpu


_LANE = 128
_VMEM_TILE_BUDGET = 24 * 1024 * 1024   # double-buffered in+out tiles per step
_VMEM_LIMIT_BYTES = 32 * 1024 * 1024   # scoped VMEM requested from compiler
_MIN_STEP_BYTES = 1 << 20              # aim for >= ~1 MiB HBM traffic / step
_MAX_BATCH_PACK = 32                   # cap on statically unrolled batch loop


def _pointwise_conv_kernel(w_ref, b_ref, x_ref, o_ref):
    """1x1 conv on one (batch-pack, spatial-tile) block.

    w_ref: (C_out, C_in)  f32 VMEM
    b_ref: (C_out, 1)     f32 VMEM
    x_ref: (NB, C_in, T)  VMEM   (T lane-dense: multiple of 128 or full H*W)
    o_ref: (NB, C_out, T) VMEM
    """
    w = w_ref[...]
    b = b_ref[...]
    nb = x_ref.shape[0]
    for i in range(nb):  # small static unroll over packed batch elements
        y = jnp.dot(w, x_ref[i], preferred_element_type=jnp.float32)
        o_ref[i] = (y + b).astype(o_ref.dtype)


def _largest_divisor_tile(hw, cap):
    """Largest multiple of 128 that divides hw and is <= cap (hw % 128 == 0)."""
    m = hw // _LANE
    cap_m = max(1, cap // _LANE)
    best = 1
    d = 1
    while d * d <= m:
        if m % d == 0:
            for q in (d, m // d):
                if best < q <= cap_m:
                    best = q
        d += 1
    return best * _LANE


def feature_map_block(x, weight, bias, *, target_tile=131072):
    """1x1 Conv2d forward (PyTorch FeatureMapBlock semantics).

    Args:
      x:      (N, C_in, H, W)     float32 (NCHW, matching PyTorch)
      weight: (C_out, C_in, 1, 1) float32 (PyTorch Conv2d weight shape)
      bias:   (C_out,)            float32
    Returns:
      (N, C_out, H, W) float32
    """
    n, c_in, h, w = x.shape
    c_out = weight.shape[0]
    hw = h * w
    itemsize = x.dtype.itemsize
    chans = c_in + c_out

    # Free views -- no transposes, no extra HBM passes (pad only if ragged+big).
    x3d = x.reshape(n, c_in, hw)
    w2d = weight.reshape(c_out, c_in).astype(jnp.float32)
    b2d = bias.reshape(c_out, 1).astype(jnp.float32)

    # Ragged H*W guard (v7x VMEM safety): only pad when a single full-H*W
    # block would exceed the per-step VMEM budget.
    hw_pad = hw
    if hw % _LANE != 0 and 2 * chans * hw * itemsize > _VMEM_TILE_BUDGET:
        hw_pad = ((hw + _LANE - 1) // _LANE) * _LANE
        x3d = jnp.pad(x3d, ((0, 0), (0, 0), (0, hw_pad - hw)))

    # Spatial tile: lane-dense, divides hw_pad, capped by target and by VMEM.
    t_cap = max(_LANE,
                (_VMEM_TILE_BUDGET // (2 * chans * itemsize)) // _LANE * _LANE)
    if hw_pad % _LANE == 0:
        t_hw = _largest_divisor_tile(hw_pad, min(target_tile, t_cap))
    else:
        t_hw = hw_pad  # small ragged H*W: single full-extent block is legal

    # Batch packing: when one spatial tile moves little data, pack several
    # batch elements per step so DMA amortizes the ~0.35us step overhead.
    step_bytes = chans * t_hw * itemsize
    nb = 1
    if step_bytes < _MIN_STEP_BYTES and n > 1:
        want = min(n, _MAX_BATCH_PACK, max(1, _MIN_STEP_BYTES // step_bytes))
        while want > 1 and 2 * want * step_bytes > _VMEM_TILE_BUDGET:
            want -= 1
        for d in range(want, 0, -1):
            if n % d == 0:
                nb = d
                break
        # Keep >= 2 grid steps when possible (v7x has 2 TensorCores/chip).
        if nb == n and hw_pad == t_hw:
            for d in range(n // 2, 0, -1):
                if n % d == 0:
                    nb = d
                    break

    grid = (n // nb, hw_pad // t_hw)

    cost = pl.CostEstimate(
        flops=2 * c_out * c_in * n * hw_pad,
        transcendentals=0,
        bytes_accessed=chans * n * hw_pad * itemsize
        + (c_out * c_in + c_out) * 4,
    )

    out3d = pl.pallas_call(
        _pointwise_conv_kernel,
        out_shape=jax.ShapeDtypeStruct((n, c_out, hw_pad), x.dtype),
        grid_spec=pltpu.PrefetchScalarGridSpec(
            num_scalar_prefetch=0,
            grid=grid,
            in_specs=[
                # Tiny params, resident in VMEM; same block every step.
                pl.BlockSpec((c_out, c_in), lambda bi, si: (0, 0)),
                pl.BlockSpec((c_out, 1), lambda bi, si: (0, 0)),
                # (NB, C_in, T) lane-dense spatial tile, NB batch elems packed.
                pl.BlockSpec((nb, c_in, t_hw), lambda bi, si: (bi, 0, si)),
            ],
            out_specs=pl.BlockSpec((nb, c_out, t_hw),
                                   lambda bi, si: (bi, 0, si)),
        ),
        compiler_params=pltpu.CompilerParams(
            dimension_semantics=("parallel", "parallel"),
            vmem_limit_bytes=_VMEM_LIMIT_BYTES),
        cost_estimate=cost,
    )(w2d, b2d, x3d)

    if hw_pad != hw:
        out3d = out3d[:, :, :hw]
    return out3d.reshape(n, c_out, h, w)


if __name__ == "__main__":
    key = jax.random.PRNGKey(0)
    k_x, k_w, k_b = jax.random.split(key, 3)

    batch, c_in, c_out, spatial = 2, 4, 8, 16

    x = jax.random.normal(k_x, (batch, c_in, spatial, spatial),
                          dtype=jnp.float32)
    # Deterministic param init (PyTorch-like uniform scale 1/sqrt(fan_in)).
    bound = 1.0 / (c_in ** 0.5)
    weight = jax.random.uniform(k_w, (c_out, c_in, 1, 1), jnp.float32,
                                -bound, bound)
    bias = jax.random.uniform(k_b, (c_out,), jnp.float32, -bound, bound)

    out = jax.jit(feature_map_block)(x, weight, bias)
    out = jax.block_until_ready(out)

    # Correctness check against plain-JAX reference of the 1x1 conv.
    ref = (jnp.einsum("nchw,oc->nohw", x, weight.reshape(c_out, c_in))
           + bias.reshape(1, c_out, 1, 1))
    assert out.shape == (batch, c_out, spatial, spatial)
    assert jnp.allclose(out, ref, atol=1e-5, rtol=1e-5)

    print("KERNEL_OK")
</pallas_src>

<mosaic_0001>
module attributes {stable_mosaic.version = 11 : i64} {
  func.func @_pointwise_conv_kernel(%arg0: i32, %arg1: i32, %arg2: memref<8x4xf32, #tpu.memory_space<vmem>>, %arg3: memref<8x1xf32, #tpu.memory_space<vmem>>, %arg4: memref<1x4x256xf32, #tpu.memory_space<vmem>>, %arg5: memref<1x8x256xf32, #tpu.memory_space<vmem>>) attributes {dimension_semantics = [#tpu.dimension_semantics<parallel>, #tpu.dimension_semantics<parallel>], iteration_bounds = array<i64: 2, 1>, scalar_prefetch = 0 : i64, scratch_operands = 0 : i64, tpu.core_type = #tpu.core_type<tc>, window_params = [{pipeline_mode = #tpu.pipeline_mode<synchronous>, transform_indices = @transform_0, window_bounds = array<i64: 8, 4>}, {pipeline_mode = #tpu.pipeline_mode<synchronous>, transform_indices = @transform_1, window_bounds = array<i64: 8, 1>}, {transform_indices = @transform_2, window_bounds = array<i64: 1, 4, 256>}, {transform_indices = @transform_3, window_bounds = array<i64: 1, 8, 256>}]} {
    %c0 = arith.constant 0 : index
    %c0_0 = arith.constant 0 : index
    %0 = vector.load %arg2[%c0, %c0_0] : memref<8x4xf32, #tpu.memory_space<vmem>>, vector<8x4xf32>
    %c0_1 = arith.constant 0 : index
    %c0_2 = arith.constant 0 : index
    %1 = vector.load %arg3[%c0_1, %c0_2] : memref<8x1xf32, #tpu.memory_space<vmem>>, vector<8x1xf32>
    %c0_3 = arith.constant 0 : index
    %c0_4 = arith.constant 0 : index
    %c0_5 = arith.constant 0 : index
    %2 = vector.load %arg4[%c0_3, %c0_4, %c0_5] : memref<1x4x256xf32, #tpu.memory_space<vmem>>, vector<1x4x256xf32>
    %3 = vector.shape_cast %2 : vector<1x4x256xf32> to vector<4x256xf32>
    %cst = arith.constant dense<0.000000e+00> : vector<8x256xf32>
    %4 = tpu.matmul %0, %3, %cst {dimension_numbers = #tpu.dot_dimension_numbers<[1], [0], [0], [1], [0, 0, 1, 1], [], []>} : vector<8x4xf32>, vector<4x256xf32>, vector<8x256xf32> -> vector<8x256xf32>
    %5 = vector.broadcast %1 : vector<8x1xf32> to vector<8x256xf32>
    %6 = arith.addf %4, %5 : vector<8x256xf32>
    %c0_6 = arith.constant 0 : index
    %c0_7 = arith.constant 0 : index
    %c0_8 = arith.constant 0 : index
    %7 = vector.load %arg5[%c0_6, %c0_7, %c0_8] : memref<1x8x256xf32, #tpu.memory_space<vmem>>, vector<1x8x256xf32>
    %8 = vector.shape_cast %7 : vector<1x8x256xf32> to vector<8x256xf32>
    %9 = vector.shape_cast %6 : vector<8x256xf32> to vector<1x8x256xf32>
    tpu.vector_store %arg5[%c0_6, %c0_7, %c0_8], %9 {strides = array<i32>} : memref<1x8x256xf32, #tpu.memory_space<vmem>>, vector<1x8x256xf32>,
    return
  }
  func.func @transform_0(%arg0: i32, %arg1: i32) -> (i32, i32) {
    %c0_i32 = arith.constant 0 : i32
    %c0_i32_0 = arith.constant 0 : i32
    %c0_i32_1 = arith.constant 0 : i32
    return %c0_i32, %c0_i32_0 : i32, i32
  }
  func.func @transform_1(%arg0: i32, %arg1: i32) -> (i32, i32) {
    %c0_i32 = arith.constant 0 : i32
    %c0_i32_0 = arith.constant 0 : i32
    %c0_i32_1 = arith.constant 0 : i32
    return %c0_i32, %c0_i32_0 : i32, i32
  }
  func.func @transform_2(%arg0: i32, %arg1: i32) -> (i32, i32, i32) {
    %c0_i32 = arith.constant 0 : i32
    %c0_i32_0 = arith.constant 0 : i32
    return %arg0, %c0_i32, %arg1 : i32, i32, i32
  }
  func.func @transform_3(%arg0: i32, %arg1: i32) -> (i32, i32, i32) {
    %c0_i32 = arith.constant 0 : i32
    %c0_i32_0 = arith.constant 0 : i32
    return %arg0, %c0_i32, %arg1 : i32, i32, i32
  }
}

</mosaic_0001>

<llo_original>
// kernel: feature_map_block.1
$region0: #{feature_map_block.1}
  #allocation0 [shape = 'u32[]', space=smem, size = 0x4, offset = 0x4, fixed_abs, tag = 'smem constant byte address 0x4 - core index']
  #allocation1 [shape = 'u32[72,128]{1,0:T(1,128)}', space=vmem, size = 0x9000, scoped, tag = 'internal scratch']
  %s0 = inlined_call_operand.vmem [shape: f32[8,4], index: 0, kind: input, shape index: {}]
  %s1 = inlined_call_operand.vmem [shape: f32[8,1], index: 1, kind: input, shape index: {}]
  %s2 = inlined_call_operand.vmem [shape: f32[2,4,256], index: 2, kind: input, shape index: {}]
  %s3 = inlined_call_operand.vmem [shape: f32[2,8,256], index: 3, kind: output, shape index: {}]
  %s4 = sld [smem:[#allocation0]]
  $region45: #{feature_map_block.1} parent=0
    _
  %s6 = ssub.s32 1, %s4
  %s7 = scalar_select 0, %s6, %s4
  loop: start=0, step=1, limit=4
  $region2: #{feature_map_block.1} parent=0 // loop_pre_header
    _
  $region3: #{feature_map_block.1} parent=0 // loop_header
    %s9 = sphi 0, %s13
    %p10 = scmp.ge.s32.totalorder %s9, 4
    %s16 = sphi 0, %s28
    %s17 = sphi 0, %s24
    %s18 = sphi 0, %s16
    %s19 = sphi 0, %s17
    %s20 = sphi 0, %s18
    %s21 = sphi 0, %s19
    %s29 = sphi 0, %s29
    %s31 = sphi 0, %s29
    %s32 = sphi 0, %s31
    %s46 = sphi 0, %s32
    %s50 = sphi 0, %s50
    %s52 = sphi 0, %s50
    %s53 = sphi 0, %s52
    %s67 = sphi 0, %s53
    %s75 = sphi 0, %s77
    %s78 = sphi 0, %s75
    %s79 = sphi 0, %s78
    %s95 = sphi 0, %s79
    %s103 = sphi 0, %s105
    %s106 = sphi 0, %s103
    %s107 = sphi 0, %s106
    %s123 = sphi 0, %s107
  $region4: #{feature_map_block.1} parent=0 // loop_header_branch
    %12 = sbr.rel (%p10) target = $region8
  $region5: #{feature_map_block.1} parent=0 // loop_body
    %s14 = ssub.s32 %s9, 1
    %s15 = ssub.s32 %s9, 2
    %s22 = sadd.s32 1, %s17
    %p23 = scmp.ge.s32.totalorder %s22, 1
    %s24 = scalar_select %p23, 0, %s22
    %s25 = sadd.s32 1, %s16
    %s26 = scalar_select %p23, %s25, %s16
    %p27 = scmp.ge.s32.totalorder %s26, 2
    %s28 = scalar_select %p27, 0, %s26
    %s30 = sadd.s32 %s29, 1
    %p33 = scmp.eq.s32.totalorder %s9, 1
    %p34 = scmp.ne.s32.totalorder %s29, %s31
    %p35 = scmp.eq.s32.totalorder %s9, 0
    %p36 = por %p34, %p35
    %p37 = scmp.ne.s32.totalorder %s29, %s31
    %p38 = scmp.eq.s32.totalorder %s14, 1
    %p39 = por %p37, %p38
    %p40 = scmp.ne.s32.totalorder %s31, %s32
    %p41 = scmp.eq.s32.totalorder %s14, 0
    %p42 = por %p40, %p41
    %p43 = scmp.ne.s32.totalorder %s31, %s32
    %p44 = scmp.eq.s32.totalorder %s15, 1
    %p45 = por %p43, %p44
    %p47 = scmp.ne.s32.totalorder %s32, %s46
    %p48 = scmp.eq.s32.totalorder %s15, 0
    %p49 = por %p47, %p48
    %s51 = sadd.s32 %s50, 1
    %p54 = scmp.eq.s32.totalorder %s9, 1
    %p55 = scmp.ne.s32.totalorder %s50, %s52
    %p56 = scmp.eq.s32.totalorder %s9, 0
    %p57 = por %p55, %p56
    %p58 = scmp.ne.s32.totalorder %s50, %s52
    %p59 = scmp.eq.s32.totalorder %s14, 1
    %p60 = por %p58, %p59
    %p61 = scmp.ne.s32.totalorder %s52, %s53
    %p62 = scmp.eq.s32.totalorder %s14, 0
    %p63 = por %p61, %p62
    %p64 = scmp.ne.s32.totalorder %s52, %s53
    %p65 = scmp.eq.s32.totalorder %s15, 1
    %p66 = por %p64, %p65
    %p68 = scmp.ne.s32.totalorder %s53, %s67
    %p69 = scmp.eq.s32.totalorder %s15, 0
    %p70 = por %p68, %p69
    %s71 = ssub.s32 %s16, %s28
    %s72 = ssub.s32 %s17, %s24
    %s73 = sor.u32 %s71, %s72
    %p74 = scmp.eq.s32.totalorder %s73, 0
    %s76 = sadd.s32 %s75, 1
    %s77 = scalar_select %p74, %s75, %s76
    %p80 = pneg %p74
    %p81 = scmp.eq.s32.totalorder %s9, 1
    %p82 = por %p80, %p81
    %p83 = scmp.ne.s32.totalorder %s75, %s78
    %p84 = scmp.eq.s32.totalorder %s9, 0
    %p85 = por %p83, %p84
    %p86 = scmp.ne.s32.totalorder %s75, %s78
    %p87 = scmp.eq.s32.totalorder %s14, 1
    %p88 = por %p86, %p87
    %p89 = scmp.ne.s32.totalorder %s78, %s79
    %p90 = scmp.eq.s32.totalorder %s14, 0
    %p91 = por %p89, %p90
    %p92 = scmp.ne.s32.totalorder %s78, %s79
    %p93 = scmp.eq.s32.totalorder %s15, 1
    %p94 = por %p92, %p93
    %p96 = scmp.ne.s32.totalorder %s79, %s95
    %p97 = scmp.eq.s32.totalorder %s15, 0
    %p98 = por %p96, %p97
    %s99 = ssub.s32 %s16, %s28
    %s100 = ssub.s32 %s17, %s24
    %s101 = sor.u32 %s99, %s100
    %p102 = scmp.eq.s32.totalorder %s101, 0
    %s104 = sadd.s32 %s103, 1
    %s105 = scalar_select %p102, %s103, %s104
    %p108 = pneg %p102
    %p109 = scmp.eq.s32.totalorder %s9, 1
    %p110 = por %p108, %p109
    %p111 = scmp.ne.s32.totalorder %s103, %s106
    %p112 = scmp.eq.s32.totalorder %s9, 0
    %p113 = por %p111, %p112
    %p114 = scmp.ne.s32.totalorder %s103, %s106
    %p115 = scmp.eq.s32.totalorder %s14, 1
    %p116 = por %p114, %p115
    %p117 = scmp.ne.s32.totalorder %s106, %s107
    %p118 = scmp.eq.s32.totalorder %s14, 0
    %p119 = por %p117, %p118
    %p120 = scmp.ne.s32.totalorder %s106, %s107
    %p121 = scmp.eq.s32.totalorder %s15, 1
    %p122 = por %p120, %p121
    %p124 = scmp.ne.s32.totalorder %s107, %s123
    %p125 = scmp.eq.s32.totalorder %s15, 0
    %p126 = por %p124, %p125
    %p127 = scmp.le.s32.totalorder 1, %s9
    %p128 = scmp.lt.s32.totalorder %s9, 3
    %p129 = pnand %p127, %p128
    %p130 = pneg %p129
    // Predicated region
    $region9: #{feature_map_block.1} parent=5 // pred_check
      _
    $region10: #{feature_map_block.1} parent=5 // pred_check_branch
      %132 = sbr.rel (%p129) target = $region12
    $region11: #{feature_map_block.1} parent=5 // pred_region
      %s133 = ssub.s32 %s9, 1
      // Predicated region
      $region13: #{feature_map_block.1} parent=11 // pred_check
        %p134 = pneg %p42
      $region14: #{feature_map_block.1} parent=11 // pred_check_branch
        %136 = sbr.rel (%p134) target = $region16
      $region15: #{feature_map_block.1} parent=11 // pred_region
        _
      $region16: #{feature_map_block.1} parent=11 // pred_fallthru
        _
      // Predicated region
      $region17: #{feature_map_block.1} parent=11 // pred_check
        %p137 = pneg %p63
      $region18: #{feature_map_block.1} parent=11 // pred_check_branch
        %139 = sbr.rel (%p137) target = $region20
      $region19: #{feature_map_block.1} parent=11 // pred_region
        _
      $region20: #{feature_map_block.1} parent=11 // pred_fallthru
        _
    $region12: #{feature_map_block.1} parent=5 // pred_fallthru
      _
    %p140 = scmp.lt.s32.totalorder %s9, 2
    // Predicated region
    $region21: #{feature_map_block.1} parent=5 // pred_check
      %p141 = pneg %p140
    $region22: #{feature_map_block.1} parent=5 // pred_check_branch
      %143 = sbr.rel (%p141) target = $region24
    $region23: #{feature_map_block.1} parent=5 // pred_region
      // Predicated region
      $region25: #{feature_map_block.1} parent=23 // pred_check
        %p144 = pneg %p85
      $region26: #{feature_map_block.1} parent=23 // pred_check_branch
        %146 = sbr.rel (%p144) target = $region28
      $region27: #{feature_map_block.1} parent=23 // pred_region
        %s147 = smul.u32 2, %s17
        %p148 = scmp.lt.s32.totalorder %s16, 1
        %s149 = scalar_select %p148, %s16, 1
        %p150 = scmp.lt.s32.totalorder %s147, 1
        %s151 = scalar_select %p150, %s147, 1
        %s152 = smul.addr %s149, 2
        %s153 = sadd.s32 %s151, %s152
        %s154 = smul.addr %s153, 4
        %s155 = scalar_lea.vmem %s2, %s154
        %s156 = smul.u32 2, %s17
      $region28: #{feature_map_block.1} parent=23 // pred_fallthru
        _
    $region24: #{feature_map_block.1} parent=5 // pred_fallthru
      _
    %p157 = scmp.le.s32.totalorder 1, %s9
    %p158 = scmp.lt.s32.totalorder %s9, 3
    %p159 = pnand %p157, %p158
    %p160 = pneg %p159
    // Predicated region
    $region29: #{feature_map_block.1} parent=5 // pred_check
      _
    $region30: #{feature_map_block.1} parent=5 // pred_check_branch
      %162 = sbr.rel (%p159) target = $region32
    $region31: #{feature_map_block.1} parent=5 // pred_region
      %s163 = ssub.s32 %s9, 1
      %p164 = pneg %p42
      %p165 = pneg %p39
      %p166 = pneg %p63
      %p167 = pneg %p60
      %s168 = smul.u32 2, %s19
      %p169 = scmp.lt.s32.totalorder %s18, 1
      %s170 = scalar_select %p169, %s18, 1
      %p171 = scmp.lt.s32.totalorder %s168, 1
      %s172 = scalar_select %p171, %s168, 1
      %s173 = smul.addr %s170, 2
      %s174 = sadd.s32 %s172, %s173
      %s175 = smul.addr %s174, 4
      %s176 = scalar_lea.vmem %s2, %s175
      %p177 = pneg %p91
      %p178 = pneg %p88
      %p179 = pneg %p119
      %p180 = pneg %p116
      %s181 = smul.u32 2, %s19
      %p182 = scmp.lt.s32.totalorder %s18, 1
      %s183 = scalar_select %p182, %s18, 1
      %p184 = scmp.lt.s32.totalorder %s181, 1
      %s185 = scalar_select %p184, %s181, 1
      %s186 = smul.addr %s183, 2
      %s187 = sadd.s32 %s185, %s186
      %s188 = smul.addr %s187, 8
      %s189 = scalar_lea.vmem %s3, %s188
      %s190 = smul.u32 2, %s19
      %p191 = scmp.lt.s32.totalorder %s18, 1
      %s192 = scalar_select %p191, %s18, 1
      %p193 = scmp.lt.s32.totalorder %s190, 1
      %s194 = scalar_select %p193, %s190, 1
      %s195 = smul.addr %s192, 2
      %s196 = sadd.s32 %s194, %s195
      %s197 = smul.addr %s196, 4
      %s198 = scalar_lea.vmem %s2, %s197
      %s199 = smul.u32 2, %s19
      %s200 = smul.u32 2, %s19
      %p201 = scmp.lt.s32.totalorder %s18, 1
      %s202 = scalar_select %p201, %s18, 1
      %p203 = scmp.lt.s32.totalorder %s200, 1
      %s204 = scalar_select %p203, %s200, 1
      %s205 = smul.addr %s202, 2
      %s206 = sadd.s32 %s204, %s205
      %s207 = smul.addr %s206, 8
      %s208 = scalar_lea.vmem %s3, %s207
      %s209 = smul.u32 2, %s19
      %v210 = vld [vmem:[%s0] sm:$0xff]
      %v211 = vld [vmem:[%s1] sm:$0xff]
      %v212 = vld [vmem:[%s198] sm:$0xff]
      %214 = vset.pattern.permute.xlu0 0
      %215 = vperm.xlu0 %214, %v211
      %v216 = vpop.permute.xlu0 %215
      %219 = vst [vmem:[#allocation1] ss:$2 sm:$0xff] %v212
      %v220 = vld.sshfl [vmem:[#allocation1] sm:$0xff pattern:$0x75316420]
      %v221 = vld.sshfl [vmem:[#allocation1 + $0x8] sm:$0xff pattern:$0x75316420]
      %vm222 = vcmask 31744
      %v224 = vsel %vm222, %v210, 0
      %vm226 = vcmask 1043456
      %v227 = vsel %vm226, %v220, 0
      %v229 = vsel %vm226, %v221, 0
      %231 = vmatpush.msra.mxu0 0.0
      %232 = vmatpush.msra.mxu0 0.0
      %233 = vmatpush.msra.mxu0 0.0
      %234 = vmatpush.msra.mxu0 0.0
      %235 = vmatpush.msra.mxu0 0.0
      %236 = vmatpush.msra.mxu0 0.0
      %237 = vmatpush.msra.mxu0 0.0
      %238 = vmatpush.msra.mxu0 0.0
      %239 = vmatpush.msra.mxu0 0.0
      %240 = vmatpush.msra.mxu0 0.0
      %241 = vmatpush.msra.mxu0 0.0
      %242 = vmatpush.msra.mxu0 0.0
      %243 = vmatpush.msra.mxu0 0.0
      %244 = vmatpush.msra.mxu0 0.0
      %245 = vmatpush.msra.mxu0 0.0
      %246 = vmatpush.msra.mxu0 %v227
      %247 = vmatmul.f32.gmra.mxu0 %v224
      %v248 = vpop.f32.mrf.mxu0
      %v249 = vadd.f32 %v216, %v248
      %250 = vdwg.mxu0
      %251 = vmatpush.msra.mxu0 0.0
      %252 = vmatpush.msra.mxu0 0.0
      %253 = vmatpush.msra.mxu0 0.0
      %254 = vmatpush.msra.mxu0 0.0
      %255 = vmatpush.msra.mxu0 0.0
      %256 = vmatpush.msra.mxu0 0.0
      %257 = vmatpush.msra.mxu0 0.0
      %258 = vmatpush.msra.mxu0 0.0
      %259 = vmatpush.msra.mxu0 0.0
      %260 = vmatpush.msra.mxu0 0.0
      %261 = vmatpush.msra.mxu0 0.0
      %262 = vmatpush.msra.mxu0 0.0
      %263 = vmatpush.msra.mxu0 0.0
      %264 = vmatpush.msra.mxu0 0.0
      %265 = vmatpush.msra.mxu0 0.0
      %266 = vmatpush.msra.mxu0 %v229
      %267 = vmatmul.f32.gmra.mxu0 %v224
      %v268 = vpop.f32.mrf.mxu0
      %v269 = vadd.f32 %v216, %v268
      %270 = vdwg.mxu0
      %271 = vst [vmem:[%s208] sm:$0xff] %v249
      %272 = vst [vmem:[%s208 + $0x8] sm:$0xff] %v269
      %s273 = smul.u32 2, %s19
      %p274 = scmp.lt.s32.totalorder %s18, 1
      %s275 = scalar_select %p274, %s18, 1
      %p276 = scmp.lt.s32.totalorder %s273, 1
      %s277 = scalar_select %p276, %s273, 1
      %s278 = smul.addr %s275, 2
      %s279 = sadd.s32 %s277, %s278
      %s280 = smul.addr %s279, 8
      %s281 = scalar_lea.vmem %s3, %s280
      // Predicated region
      $region33: #{feature_map_block.1} parent=31 // pred_check
        %p282 = pneg %p116
      $region34: #{feature_map_block.1} parent=31 // pred_check_branch
        %284 = sbr.rel (%p282) target = $region36
      $region35: #{feature_map_block.1} parent=31 // pred_region
        %s285 = smul.u32 2, %s19
      $region36: #{feature_map_block.1} parent=31 // pred_fallthru
        _
    $region32: #{feature_map_block.1} parent=5 // pred_fallthru
      _
    %p286 = scmp.le.s32.totalorder 2, %s9
    // Predicated region
    $region37: #{feature_map_block.1} parent=5 // pred_check
      %p287 = pneg %p286
    $region38: #{feature_map_block.1} parent=5 // pred_check_branch
      %289 = sbr.rel (%p287) target = $region40
    $region39: #{feature_map_block.1} parent=5 // pred_region
      %s290 = ssub.s32 %s9, 2
      // Predicated region
      $region41: #{feature_map_block.1} parent=39 // pred_check
        %p291 = pneg %p122
      $region42: #{feature_map_block.1} parent=39 // pred_check_branch
        %293 = sbr.rel (%p291) target = $region44
      $region43: #{feature_map_block.1} parent=39 // pred_region
        %s294 = smul.u32 2, %s21
        %p295 = scmp.lt.s32.totalorder %s20, 1
        %s296 = scalar_select %p295, %s20, 1
        %p297 = scmp.lt.s32.totalorder %s294, 1
        %s298 = scalar_select %p297, %s294, 1
        %s299 = smul.addr %s296, 2
        %s300 = sadd.s32 %s298, %s299
        %s301 = smul.addr %s300, 8
        %s302 = scalar_lea.vmem %s3, %s301
      $region44: #{feature_map_block.1} parent=39 // pred_fallthru
        _
    $region40: #{feature_map_block.1} parent=5 // pred_fallthru
      _
  $region6: #{feature_map_block.1} parent=0 // loop_footer
    %s13 = sadd.s32 1, %s9
  $region7: #{feature_map_block.1} parent=0 // loop_footer_branch
    %8 = sbr.rel target = $region3
  $region8: #{feature_map_block.1} parent=0 // loop_exit
    _

</llo_original>
